<compile_context>
chip_gen: v6e
topology: v6e:2x2x1
jax: 0.10.0
libtpu: 0.0.40
codegen_flags: <defaults>
</compile_context>

<pallas_src>
import functools

import jax
import jax.numpy as jnp
from jax.experimental import pallas as pl
from jax.experimental.pallas import tpu as pltpu

_LANES = 128
_MAX_BLOCK_IN_BYTES = 4 * 1024 * 1024  # ~4 MiB per input per grid step


def _round_up(a, b):
    return (a + b - 1) // b * b


def _pick_vmem_limit():
    """Scoped-VMEM limit: generous on v5e/v6e (128 MiB), capped for v7x (64 MiB)."""
    cap = 64 * 1024 * 1024
    try:
        cap = int(pltpu.get_tpu_info().vmem_capacity_bytes)
    except Exception:
        pass
    return max(32 * 1024 * 1024, min(cap - 16 * 1024 * 1024, 64 * 1024 * 1024))


def _pick_block_rows(rows, itemsize, sub_align, vmem_limit, max_block_rows=None):
    budget = vmem_limit - 8 * 1024 * 1024  # headroom for outputs / misc
    # Worst-case per-step VMEM per row-of-128-lanes: 2 inputs x 2 pipeline
    # buffers in the native dtype + ~4 live f32 intermediates of block shape.
    per_row = _LANES * (4 * itemsize + 4 * 4)
    by_vmem = budget // per_row
    by_bytes = _MAX_BLOCK_IN_BYTES // (_LANES * itemsize)
    max_rows = max(sub_align, (min(by_vmem, by_bytes) // sub_align) * sub_align)
    block_rows = min(max_rows, _round_up(rows, sub_align))
    if max_block_rows is not None:  # test hook: force multi-tile grids on small inputs
        block_rows = min(block_rows,
                         max(sub_align, (max_block_rows // sub_align) * sub_align))
    return block_rows


def _mse_partial_kernel(x_ref, t_ref, o_ref, *, block_rows, total_rows,
                        inner_tiles, n_tiles, needs_mask):
    c = pl.program_id(0)   # slice (TensorCore shard) index
    i = pl.program_id(1)   # tile index within the slice

    @pl.when(i == 0)
    def _():
        o_ref[...] = jnp.zeros_like(o_ref)

    d = x_ref[...].astype(jnp.float32) - t_ref[...].astype(jnp.float32)
    sq = d * d

    def _accumulate(vals):
        # Partial reduce (block_rows, 128) -> (8, 128) along the major axis:
        # pure VPU vreg adds; the single cross-lane reduction happens once,
        # in the tiny wrapper epilogue over the per-slice partial tiles.
        o_ref[...] += vals.reshape(block_rows // 8, 8, _LANES).sum(axis=0)

    if needs_mask:
        g = c * inner_tiles + i  # global tile index

        @pl.when(g < n_tiles - 1)
        def _():  # steady-state tiles: unmasked accumulate
            _accumulate(sq)

        @pl.when(g >= n_tiles - 1)
        def _():  # last real (possibly partial) tile and ghost tiles
            row_ids = (jax.lax.broadcasted_iota(jnp.int32, (block_rows, 1), 0)
                       + g * block_rows)
            _accumulate(jnp.where(row_ids < total_rows, sq, 0.0))
    else:
        _accumulate(sq)


def mse_loss_pallas(x, target, size_average=True, *, max_block_rows=None):
    """Equivalent of _Loss (MSE backend): mean/sum of (x - target)**2."""
    assert x.shape == target.shape, "input and target must have the same shape"
    n_elems = int(x.size)

    xf = x.reshape(-1)
    tf = target.reshape(-1)

    # Lane-tail pad (< 128 elements) only when numel isn't a multiple of 128;
    # padded zeros contribute 0 to the sum.  (See TODO(synk) at top of file.)
    rem = (-n_elems) % _LANES
    if rem:
        xf = jnp.pad(xf, (0, rem))
        tf = jnp.pad(tf, (0, rem))
    rows = (n_elems + rem) // _LANES

    x2d = xf.reshape(rows, _LANES)
    t2d = tf.reshape(rows, _LANES)

    # Sublane alignment for the block's second-to-last dim (8 for f32,
    # 16 for bf16, 32 for int8/fp8) — valid for both input dtypes.
    min_itemsize = min(x.dtype.itemsize, target.dtype.itemsize)
    sub_align = max(8, 32 // max(1, min_itemsize))

    vmem_limit = _pick_vmem_limit()
    block_rows = _pick_block_rows(rows, min_itemsize, sub_align, vmem_limit,
                                  max_block_rows=max_block_rows)

    n_tiles = pl.cdiv(rows, block_rows)
    num_slices = 2 if n_tiles >= 2 else 1          # 2 TensorCores on v7x
    inner_tiles = pl.cdiv(n_tiles, num_slices)
    needs_mask = (num_slices * inner_tiles * block_rows != rows)

    kernel = functools.partial(
        _mse_partial_kernel,
        block_rows=block_rows,
        total_rows=rows,
        inner_tiles=inner_tiles,
        n_tiles=n_tiles,
        needs_mask=needs_mask,
    )

    def in_index(c, i):
        # Clamp ghost tiles (when n_tiles doesn't split evenly across slices)
        # onto the last real block; their contribution is masked to zero.
        return (jnp.minimum(c * inner_tiles + i, n_tiles - 1), 0)

    partials = pl.pallas_call(
        kernel,
        out_shape=jax.ShapeDtypeStruct((num_slices * 8, _LANES), jnp.float32),
        grid_spec=pltpu.PrefetchScalarGridSpec(
            num_scalar_prefetch=0,
            grid=(num_slices, inner_tiles),
            in_specs=[
                pl.BlockSpec((block_rows, _LANES), in_index),
                pl.BlockSpec((block_rows, _LANES), in_index),
            ],
            out_specs=pl.BlockSpec((8, _LANES), lambda c, i: (c, 0)),
        ),
        compiler_params=pltpu.CompilerParams(
            dimension_semantics=("parallel", "arbitrary"),
            vmem_limit_bytes=vmem_limit,
        ),
    )(x2d, t2d)

    total = jnp.sum(partials, dtype=jnp.float32)
    if size_average:
        total = total * (1.0 / n_elems)
    return total


if __name__ == "__main__":
    key = jax.random.PRNGKey(0)
    k1, k2, k3, k4, k5, k6 = jax.random.split(key, 6)

    # Small NCHW shapes, as the BEGAN losses take image-shaped tensors.
    x = jax.random.normal(k1, (2, 4, 16, 16), dtype=jnp.float32)
    t = jax.random.normal(k2, (2, 4, 16, 16), dtype=jnp.float32)

    loss = mse_loss_pallas(x, t, size_average=True)
    jax.block_until_ready(loss)
    ref = jnp.mean((x - t) ** 2)
    assert jnp.allclose(loss, ref, rtol=1e-5, atol=1e-6), (loss, ref)

    # size_average=False (sum reduction).
    loss_sum = mse_loss_pallas(x, t, size_average=False)
    jax.block_until_ready(loss_sum)
    ref_sum = jnp.sum((x - t) ** 2)
    assert jnp.allclose(loss_sum, ref_sum, rtol=1e-5, atol=1e-4), (loss_sum, ref_sum)

    # Exercise the multi-tile, two-slice ("parallel") grid on a small input by
    # forcing a tiny block size (even split, no mask needed).
    loss_p = mse_loss_pallas(x, t, size_average=True, max_block_rows=8)
    jax.block_until_ready(loss_p)
    assert jnp.allclose(loss_p, ref, rtol=1e-5, atol=1e-6), (loss_p, ref)

    # Exercise ghost tiles (odd tile count split over 2 slices) + edge mask.
    xg = jax.random.normal(k3, (2, 4, 16, 24), dtype=jnp.float32)  # 3072 elems
    tg = jax.random.normal(k4, (2, 4, 16, 24), dtype=jnp.float32)
    loss_g = mse_loss_pallas(xg, tg, size_average=True, max_block_rows=8)
    jax.block_until_ready(loss_g)
    ref_g = jnp.mean((xg - tg) ** 2)
    assert jnp.allclose(loss_g, ref_g, rtol=1e-5, atol=1e-6), (loss_g, ref_g)

    # Ragged element count (not a multiple of 128) exercises the lane-tail pad
    # and the in-kernel edge mask for the partial last block.
    xr = jax.random.normal(k5, (3, 5, 7, 11), dtype=jnp.float32)
    tr = jax.random.normal(k6, (3, 5, 7, 11), dtype=jnp.float32)
    loss_r = mse_loss_pallas(xr, tr, size_average=True)
    jax.block_until_ready(loss_r)
    ref_r = jnp.mean((xr - tr) ** 2)
    assert jnp.allclose(loss_r, ref_r, rtol=1e-5, atol=1e-6), (loss_r, ref_r)

    # bf16 inputs stream in native dtype (no wrapper upcast); compute is f32.
    xb = x.astype(jnp.bfloat16)
    tb = t.astype(jnp.bfloat16)
    loss_b = mse_loss_pallas(xb, tb, size_average=True)
    jax.block_until_ready(loss_b)
    ref_b = jnp.mean((xb.astype(jnp.float32) - tb.astype(jnp.float32)) ** 2)
    assert jnp.allclose(loss_b, ref_b, rtol=1e-3, atol=1e-3), (loss_b, ref_b)

    print("KERNEL_OK")
</pallas_src>

<mosaic_0001>
module attributes {stable_mosaic.version = 11 : i64} {
  func.func @_mse_partial_kernel(%arg0: i32, %arg1: i32, %arg2: memref<16x128xf32, #tpu.memory_space<vmem>>, %arg3: memref<16x128xf32, #tpu.memory_space<vmem>>, %arg4: memref<8x128xf32, #tpu.memory_space<vmem>>) attributes {dimension_semantics = [#tpu.dimension_semantics<parallel>, #tpu.dimension_semantics<arbitrary>], iteration_bounds = array<i64: 1, 1>, scalar_prefetch = 0 : i64, scratch_operands = 0 : i64, tpu.core_type = #tpu.core_type<tc>, window_params = [{transform_indices = @transform_0, window_bounds = array<i64: 16, 128>}, {transform_indices = @transform_1, window_bounds = array<i64: 16, 128>}, {transform_indices = @transform_2, window_bounds = array<i64: 8, 128>}]} {
    %c0_i32 = arith.constant 0 : i32
    %0 = arith.cmpi eq, %arg1, %c0_i32 : i32
    %1 = arith.extui %0 : i1 to i32
    %c0_i32_0 = arith.constant 0 : i32
    %2 = arith.cmpi ne, %1, %c0_i32_0 : i32
    scf.if %2 {
      %cst_8 = arith.constant 0.000000e+00 : f32
      %12 = vector.broadcast %cst_8 : f32 to vector<8x128xf32>
      %c0_9 = arith.constant 0 : index
      %c0_10 = arith.constant 0 : index
      %13 = vector.load %arg4[%c0_9, %c0_10] : memref<8x128xf32, #tpu.memory_space<vmem>>, vector<8x128xf32>
      tpu.vector_store %arg4[%c0_9, %c0_10], %12 {strides = array<i32>} : memref<8x128xf32, #tpu.memory_space<vmem>>, vector<8x128xf32>,
    } else {
    }
    %c0 = arith.constant 0 : index
    %c0_1 = arith.constant 0 : index
    %3 = vector.load %arg2[%c0, %c0_1] : memref<16x128xf32, #tpu.memory_space<vmem>>, vector<16x128xf32>
    %c0_2 = arith.constant 0 : index
    %c0_3 = arith.constant 0 : index
    %4 = vector.load %arg3[%c0_2, %c0_3] : memref<16x128xf32, #tpu.memory_space<vmem>>, vector<16x128xf32>
    %5 = arith.subf %3, %4 : vector<16x128xf32>
    %6 = arith.mulf %5, %5 : vector<16x128xf32>
    %c0_4 = arith.constant 0 : index
    %c0_5 = arith.constant 0 : index
    %7 = vector.load %arg4[%c0_4, %c0_5] : memref<8x128xf32, #tpu.memory_space<vmem>>, vector<8x128xf32>
    %8 = vector.shape_cast %6 : vector<16x128xf32> to vector<2x8x128xf32>
    %cst = arith.constant dense<0.000000e+00> : vector<8x128xf32>
    %9 = vector.multi_reduction <add>, %8, %cst [0] : vector<2x8x128xf32> to vector<8x128xf32>
    %10 = arith.addf %7, %9 : vector<8x128xf32>
    %c0_6 = arith.constant 0 : index
    %c0_7 = arith.constant 0 : index
    %11 = vector.load %arg4[%c0_6, %c0_7] : memref<8x128xf32, #tpu.memory_space<vmem>>, vector<8x128xf32>
    tpu.vector_store %arg4[%c0_6, %c0_7], %10 {strides = array<i32>} : memref<8x128xf32, #tpu.memory_space<vmem>>, vector<8x128xf32>,
    return
  }
  func.func @transform_0(%arg0: i32, %arg1: i32) -> (i32, i32) {
    %c1_i32 = arith.constant 1 : i32
    %0 = arith.muli %arg0, %c1_i32 : i32
    %1 = arith.addi %0, %arg1 : i32
    %c0_i32 = arith.constant 0 : i32
    %2 = arith.minsi %1, %c0_i32 : i32
    %c0_i32_0 = arith.constant 0 : i32
    %c0_i32_1 = arith.constant 0 : i32
    return %2, %c0_i32_0 : i32, i32
  }
  func.func @transform_1(%arg0: i32, %arg1: i32) -> (i32, i32) {
    %c1_i32 = arith.constant 1 : i32
    %0 = arith.muli %arg0, %c1_i32 : i32
    %1 = arith.addi %0, %arg1 : i32
    %c0_i32 = arith.constant 0 : i32
    %2 = arith.minsi %1, %c0_i32 : i32
    %c0_i32_0 = arith.constant 0 : i32
    %c0_i32_1 = arith.constant 0 : i32
    return %2, %c0_i32_0 : i32, i32
  }
  func.func @transform_2(%arg0: i32, %arg1: i32) -> (i32, i32) {
    %c0_i32 = arith.constant 0 : i32
    %c0_i32_0 = arith.constant 0 : i32
    return %arg0, %c0_i32 : i32, i32
  }
}

</mosaic_0001>

<llo_original>
// kernel: tpu_custom_call.1
$region0: #{tpu_custom_call.1}
  #allocation0 [shape = 'u32[]', space=smem, size = 0x4, offset = 0x4, fixed_abs, tag = 'smem constant byte address 0x4 - core index']
  #allocation1 [shape = 'u32[144,128]{1,0:T(1,128)}', space=vmem, size = 0x12000, scoped, tag = 'internal scratch']
  %s0 = inlined_call_operand.hbm [shape: f32[16,128], index: 0, kind: input, shape index: {}]
  %s1 = inlined_call_operand.hbm [shape: f32[16,128], index: 1, kind: input, shape index: {}]
  %s2 = inlined_call_operand.hbm [shape: f32[8,128], index: 2, kind: output, shape index: {}]
  %s3 = sld [smem:[#allocation0]]
  $region30: #{tpu_custom_call.1} parent=0
    _
  %s5 = ssub.s32 1, %s3
  %s6 = scalar_select 0, %s5, %s3
  $region1: #{tpu_custom_call.1} parent=0
    #allocation2 [shape = 'u8[8192]{0}', space=vmem, size = 0x2000, scoped, tag = 'input window, operand 0, single buffered']
    #allocation3 [shape = 's32[1]{0}', space=sflag, size = 0x4, scoped, tag = 'scoped memory for tpu_custom_call.1']
    #allocation4 [shape = 's32[1]{0}', space=sflag, size = 0x4, scoped, tag = 'scoped memory for tpu_custom_call.1']
    #allocation5 [shape = 'u8[8192]{0}', space=vmem, size = 0x2000, scoped, tag = 'input window, operand 1, single buffered']
    #allocation6 [shape = 's32[1]{0}', space=sflag, size = 0x4, scoped, tag = 'scoped memory for tpu_custom_call.1']
    #allocation7 [shape = 'u8[4096]{0}', space=vmem, size = 0x1000, scoped, tag = 'output window, operand 0, single buffered']
    %7 = vsyncpa [#allocation3], 0
    %8 = vsyncpa [#allocation6], 0
    %9 = vsyncpa [#allocation4], 0
    // Predicated region
    $region2: #{tpu_custom_call.1} parent=1 // pred_check
      _
    $region3: #{tpu_custom_call.1} parent=1 // pred_check_branch
      %11 = sbr.rel (0) target = $region5
    $region4: #{tpu_custom_call.1} parent=1 // pred_region
      %s12 = sadd.s32 0, 0
      %p13 = scmp.lt.s32.totalorder %s12, 0
      %s14 = scalar_select %p13, %s12, 0
      %s15 = smul.u32 2, %s14
      %s17 = ssub.s32 256, 256
      %18 = vsyncadd [#allocation3], %s17
      %s19 = smul.addr %s15, 128
      %s20 = scalar_lea.hbm %s0, %s19
      %s21 = sshll.u32 [#allocation2], 4
      %s22 = int_to_ptr.vmem [resolvable:$true] %s21
      %27 = dma.hbm_to_vmem [thread:$0]  %s20, 256, %s22, [#allocation3], 128, 128, 8
    $region5: #{tpu_custom_call.1} parent=1 // pred_fallthru
      _
    // Predicated region
    $region6: #{tpu_custom_call.1} parent=1 // pred_check
      _
    $region7: #{tpu_custom_call.1} parent=1 // pred_check_branch
      %29 = sbr.rel (0) target = $region9
    $region8: #{tpu_custom_call.1} parent=1 // pred_region
      %s30 = sadd.s32 0, 0
      %p31 = scmp.lt.s32.totalorder %s30, 0
      %s32 = scalar_select %p31, %s30, 0
      %s33 = smul.u32 2, %s32
      %s35 = ssub.s32 256, 256
      %36 = vsyncadd [#allocation6], %s35
      %s37 = smul.addr %s33, 128
      %s38 = scalar_lea.hbm %s1, %s37
      %s39 = sshll.u32 [#allocation5], 4
      %s40 = int_to_ptr.vmem [resolvable:$true] %s39
      %45 = dma.hbm_to_vmem [thread:$0]  %s38, 256, %s40, [#allocation6], 128, 128, 8
    $region9: #{tpu_custom_call.1} parent=1 // pred_fallthru
      _
    // Predicated region
    $region10: #{tpu_custom_call.1} parent=1 // pred_check
      _
    $region11: #{tpu_custom_call.1} parent=1 // pred_check_branch
      %47 = sbr.rel (0) target = $region13
    $region12: #{tpu_custom_call.1} parent=1 // pred_region
      %48 = dma.done [#allocation3], 256
    $region13: #{tpu_custom_call.1} parent=1 // pred_fallthru
      _
    // Predicated region
    $region14: #{tpu_custom_call.1} parent=1 // pred_check
      _
    $region15: #{tpu_custom_call.1} parent=1 // pred_check_branch
      %50 = sbr.rel (0) target = $region17
    $region16: #{tpu_custom_call.1} parent=1 // pred_region
      %51 = dma.done [#allocation6], 256
    $region17: #{tpu_custom_call.1} parent=1 // pred_fallthru
      _
    %s52 = sadd.s32 0, 0
    %p53 = scmp.lt.s32.totalorder %s52, 0
    %s54 = scalar_select %p53, %s52, 0
    %s55 = smul.u32 2, %s54
    %s56 = sadd.s32 0, 0
    %p57 = scmp.lt.s32.totalorder %s56, 0
    %s58 = scalar_select %p57, %s56, 0
    %s59 = smul.u32 2, %s58
    %p60 = scmp.eq.s32.totalorder 0, 0
    // Predicated region
    $region18: #{tpu_custom_call.1} parent=1 // pred_check
      %p61 = pneg %p60
    $region19: #{tpu_custom_call.1} parent=1 // pred_check_branch
      %63 = sbr.rel (%p61) target = $region21
    $region20: #{tpu_custom_call.1} parent=1 // pred_region
      %64 = vst [vmem:[#allocation7] sm:$0xff] 0.0
    $region21: #{tpu_custom_call.1} parent=1 // pred_fallthru
      _
    %v65 = vld [vmem:[#allocation2] sm:$0xff]
    %v66 = vld [vmem:[#allocation2 + $0x8] sm:$0xff]
    %v67 = vld [vmem:[#allocation5] sm:$0xff]
    %v68 = vld [vmem:[#allocation5 + $0x8] sm:$0xff]
    %v69 = vsub.f32 %v65, %v67
    %v70 = vsub.f32 %v66, %v68
    %v71 = vmul.f32 %v69, %v69
    %v72 = vmul.f32 %v70, %v70
    %v73 = vld [vmem:[#allocation7] sm:$0xff]
    %v74 = vadd.f32 %v71, %v72
    %v75 = vadd.f32 %v73, %v74
    %76 = vst [vmem:[#allocation7] sm:$0xff] %v75
    // Predicated region
    $region22: #{tpu_custom_call.1} parent=1 // pred_check
      _
    $region23: #{tpu_custom_call.1} parent=1 // pred_check_branch
      %78 = sbr.rel (0) target = $region25
    $region24: #{tpu_custom_call.1} parent=1 // pred_region
      %s80 = ssub.s32 128, 128
      %81 = vsyncadd [#allocation4], %s80
      %s83 = sshll.u32 [#allocation7], 4
      %s84 = int_to_ptr.vmem [resolvable:$true] %s83
      %86 = dma.vmem_to_hbm [thread:$0]  %s84, 128, %s2, [#allocation4]
    $region25: #{tpu_custom_call.1} parent=1 // pred_fallthru
      _
    // Predicated region
    $region26: #{tpu_custom_call.1} parent=1 // pred_check
      _
    $region27: #{tpu_custom_call.1} parent=1 // pred_check_branch
      %88 = sbr.rel (0) target = $region29
    $region28: #{tpu_custom_call.1} parent=1 // pred_region
      %89 = dma.done [#allocation4], 128
    $region29: #{tpu_custom_call.1} parent=1 // pred_fallthru
      _
    %90 = vsyncpa [#allocation3], 1
    %91 = vsyncpa [#allocation6], 1
    %92 = vsyncpa [#allocation4], 1

</llo_original>
